<compile_context>
chip_gen: v7x
topology: tpu7x:2x2x1
jax: 0.10.0
libtpu: 0.0.40
codegen_flags: <defaults>
</compile_context>

<pallas_src>
import functools

import jax
import jax.numpy as jnp
from jax import lax
from jax.experimental import pallas as pl
from jax.experimental.pallas import tpu as pltpu


def _round_up(n, m):
    return ((n + m - 1) // m) * m


def _cdiv(a, b):
    return -(-a // b)


def next_predict_kernel(x_ref, wd_ref, bd_ref, o_ref):
    # acc[r, n] = sum_k wd[r, k] * x[n, k]  -- MXU "NT" matmul (contract both last dims,
    # same pattern as q @ k^T in flash attention). Row 0 of the padded weight carries
    # w_d = W_eff[:, 0] - W_eff[:, 1]; rows 1..7 are zero padding to a native sublane tile.
    acc = lax.dot_general(
        wd_ref[...], x_ref[...],
        dimension_numbers=(((1,), (1,)), ((), ())),
        preferred_element_type=jnp.float32,
    )                                                   # (8, TILE_B) f32
    d = acc[0:1, :] + bd_ref[0]                         # (1, TILE_B): logit0 - logit1 per row

    # 2-class log_softmax with no cross-lane (XLU) reductions:
    #   sp = softplus(d);  logp0 = d - sp;  logp1 = -sp      (pure VPU/EUP, f32)
    sp = jnp.maximum(d, 0.0) + jnp.log1p(jnp.exp(-jnp.abs(d)))   # stable softplus(d)

    # Lane-dense (2, TILE_B) output block: row 0 = logp0, row 1 = logp1.
    row = lax.broadcasted_iota(jnp.int32, (2, d.shape[1]), 0)
    o_ref[...] = jnp.where(row == 0, d - sp, -sp).astype(o_ref.dtype)


@functools.partial(jax.jit, static_argnames=("tile_b",))
def next_predict(x, w1, b1, w2, b2, *, tile_b=4096):
    """Forward pass of NextPredict. x: (B, 2H) f32 or bf16. Returns (B, 2) f32 log-probs."""
    B, in_dim = x.shape
    H = w1.shape[1]
    assert w1.shape == (in_dim, H) and w2.shape == (H, 2)

    f32 = jnp.float32
    # Algebraic fusion of Linear -> Linear (no nonlinearity between them in the module):
    #   logits = (x @ w1 + b1) @ w2 + b2 = x @ (w1 @ w2) + (b1 @ w2 + b2)
    w_fused = jnp.asarray(w1, f32) @ jnp.asarray(w2, f32)                          # (2H, 2)
    b_fused = jnp.asarray(b1, f32) @ jnp.asarray(w2, f32) + jnp.asarray(b2, f32)   # (2,)
    # Only the logit difference feeds the 2-class log-softmax.
    w_d = w_fused[:, 0] - w_fused[:, 1]                                            # (2H,)
    b_d = (b_fused[0] - b_fused[1]).reshape(1)                                     # (1,)
    # Pad the weight to a native (8, 2H) sublane tile (row 0 = w_d, rows 1..7 = 0) and match
    # x's dtype so a bf16 producer gets a native bf16 MXU matmul (accumulation stays f32).
    w_d_pad = jnp.zeros((8, in_dim), f32).at[0, :].set(w_d).astype(x.dtype)

    # Batch tiling: large tiles to amortize per-grid-step overhead, multiple of 128 so the
    # (2, tile_b) output block is lane-aligned, and >= 2 grid steps when B allows it so the
    # "parallel" axis can be sharded across both v7x TensorCores.
    lane = 128
    tile_b = max(lane, min(_round_up(tile_b, lane), _round_up(_cdiv(B, 2), lane)))
    grid = (_cdiv(B, tile_b),)   # last block may be partial; Pallas clips reads/writes

    out_t = pl.pallas_call(
        next_predict_kernel,
        out_shape=jax.ShapeDtypeStruct((2, B), jnp.float32),
        grid=grid,
        in_specs=[
            # x tile marches with the batch grid index (double-buffered by Pallas).
            pl.BlockSpec((tile_b, in_dim), lambda i: (i, 0)),
            # Fused/padded weight: same block every step -> stays VMEM-resident (one DMA).
            pl.BlockSpec((8, in_dim), lambda i: (0, 0)),
            # Fused bias difference: single f32 scalar in SMEM.
            pl.BlockSpec(memory_space=pltpu.MemorySpace.SMEM),
        ],
        # Lane-dense (2, tile_b) output block: 8 B of HBM writeback per batch row.
        out_specs=pl.BlockSpec((2, tile_b), lambda i: (0, i)),
        compiler_params=pltpu.CompilerParams(
            dimension_semantics=("parallel",),
        ),
        cost_estimate=pl.CostEstimate(
            flops=2 * B * in_dim + 8 * B,
            transcendentals=2 * B,
            bytes_accessed=(B * in_dim * x.dtype.itemsize         # x read (dominant)
                            + 2 * B * 4                           # (2, B) f32 output write
                            + 8 * in_dim * w_d_pad.dtype.itemsize + 4),   # params
        ),
    )(x, w_d_pad, b_d)

    # The module returns (B, 2); this transpose only touches 8 B per batch row.
    return out_t.T


def next_predict_ref(x, w1, b1, w2, b2):
    h = x.astype(jnp.float32) @ w1 + b1
    logits = h @ w2 + b2
    return jax.nn.log_softmax(logits, axis=-1)


if __name__ == "__main__":
    hidden = 32
    key = jax.random.PRNGKey(0)
    kx, kw1, kb1, kw2, kb2 = jax.random.split(key, 5)

    # Parameters (shapes from NextPredict.__init__), stored as (in, out) = torch weight.T:
    #   linear:  Linear(2*hidden, hidden) -> w1 (2H, H), b1 (H,)
    #   linear1: Linear(hidden, 2)        -> w2 (H, 2),  b2 (2,)
    w1 = jax.random.normal(kw1, (2 * hidden, hidden), dtype=jnp.float32) * 0.1
    b1 = jax.random.normal(kb1, (hidden,), dtype=jnp.float32) * 0.1
    w2 = jax.random.normal(kw2, (hidden, 2), dtype=jnp.float32) * 0.1
    b2 = jax.random.normal(kb2, (2,), dtype=jnp.float32) * 0.1

    # 1) Small batch: single (partial) tile.
    x_small = jax.random.normal(kx, (8, 2 * hidden), dtype=jnp.float32)
    out_small = jax.block_until_ready(next_predict(x_small, w1, b1, w2, b2))
    ref_small = next_predict_ref(x_small, w1, b1, w2, b2)
    assert out_small.shape == (8, 2)
    assert jnp.allclose(out_small, ref_small, atol=1e-4, rtol=1e-4), float(
        jnp.max(jnp.abs(out_small - ref_small)))

    # 2) Larger batch: multi-step "parallel" grid with a partial last block (no wrapper pad).
    x_big = jax.random.normal(jax.random.PRNGKey(1), (1000, 2 * hidden), dtype=jnp.float32)
    out_big = jax.block_until_ready(next_predict(x_big, w1, b1, w2, b2))
    ref_big = next_predict_ref(x_big, w1, b1, w2, b2)
    assert out_big.shape == (1000, 2)
    assert jnp.allclose(out_big, ref_big, atol=1e-4, rtol=1e-4), float(
        jnp.max(jnp.abs(out_big - ref_big)))

    # 3) bf16 x arriving from the producer (no wrapper-side cast): halves the dominant HBM read.
    x_bf16 = x_big.astype(jnp.bfloat16)
    out_bf16 = jax.block_until_ready(next_predict(x_bf16, w1, b1, w2, b2))
    ref_bf16 = next_predict_ref(x_bf16.astype(jnp.float32), w1, b1, w2, b2)
    assert out_bf16.shape == (1000, 2)
    assert jnp.allclose(out_bf16, ref_bf16, atol=5e-2, rtol=5e-2)

    print("KERNEL_OK")
</pallas_src>

<mosaic_0001>
module attributes {stable_mosaic.version = 11 : i64} {
  func.func @next_predict_kernel(%arg0: i32, %arg1: memref<128x64xf32, #tpu.memory_space<vmem>>, %arg2: memref<8x64xf32, #tpu.memory_space<vmem>>, %arg3: memref<1xf32, #tpu.memory_space<smem>>, %arg4: memref<2x128xf32, #tpu.memory_space<vmem>>) attributes {dimension_semantics = [#tpu.dimension_semantics<parallel>], iteration_bounds = array<i64: 1>, scalar_prefetch = 0 : i64, scratch_operands = 0 : i64, tpu.core_type = #tpu.core_type<tc>, window_params = [{transform_indices = @transform_0, window_bounds = array<i64: 128, 64>}, {pipeline_mode = #tpu.pipeline_mode<synchronous>, transform_indices = @transform_1, window_bounds = array<i64: 8, 64>}, {transform_indices = @transform_2, window_bounds = array<i64: 1>}, {transform_indices = @transform_3, window_bounds = array<i64: 2, 128>}]} {
    %c0 = arith.constant 0 : index
    %c0_0 = arith.constant 0 : index
    %0 = vector.load %arg2[%c0, %c0_0] : memref<8x64xf32, #tpu.memory_space<vmem>>, vector<8x64xf32>
    %c0_1 = arith.constant 0 : index
    %c0_2 = arith.constant 0 : index
    %1 = vector.load %arg1[%c0_1, %c0_2] : memref<128x64xf32, #tpu.memory_space<vmem>>, vector<128x64xf32>
    %cst = arith.constant dense<0.000000e+00> : vector<8x128xf32>
    %2 = tpu.matmul %0, %1, %cst {dimension_numbers = #tpu.dot_dimension_numbers<[1], [1], [0], [0], [0, 0, 1, 0], [], []>} : vector<8x64xf32>, vector<128x64xf32>, vector<8x128xf32> -> vector<8x128xf32>
    %3 = vector.extract_strided_slice %2 {offsets = [0, 0], sizes = [1, 128], strides = [1, 1]} : vector<8x128xf32> to vector<1x128xf32>
    %c0_3 = arith.constant 0 : index
    %4 = memref.load %arg3[%c0_3] : memref<1xf32, #tpu.memory_space<smem>>
    %5 = vector.broadcast %4 : f32 to vector<1x128xf32>
    %6 = arith.addf %3, %5 : vector<1x128xf32>
    %cst_4 = arith.constant 0.000000e+00 : f32
    %7 = vector.broadcast %cst_4 : f32 to vector<1x128xf32>
    %8 = arith.maximumf %6, %7 : vector<1x128xf32>
    %9 = math.absf %6 : vector<1x128xf32>
    %cst_5 = arith.constant 0.000000e+00 : f32
    %10 = vector.broadcast %cst_5 : f32 to vector<1x128xf32>
    %11 = arith.subf %10, %9 : vector<1x128xf32>
    %12 = math.exp %11 : vector<1x128xf32>
    %13 = math.log1p %12 : vector<1x128xf32>
    %14 = arith.addf %8, %13 : vector<1x128xf32>
    %15 = tpu.iota {dimensions = array<i32: 0>} : vector<2x128xi32>
    %c0_i32 = arith.constant 0 : i32
    %16 = vector.broadcast %c0_i32 : i32 to vector<2x128xi32>
    %17 = arith.cmpi eq, %15, %16 : vector<2x128xi32>
    %18 = arith.subf %6, %14 : vector<1x128xf32>
    %cst_6 = arith.constant 0.000000e+00 : f32
    %19 = vector.broadcast %cst_6 : f32 to vector<1x128xf32>
    %20 = arith.subf %19, %14 : vector<1x128xf32>
    %21 = vector.shape_cast %18 : vector<1x128xf32> to vector<1x128xf32>
    %22 = vector.broadcast %21 : vector<1x128xf32> to vector<2x128xf32>
    %23 = vector.shape_cast %20 : vector<1x128xf32> to vector<1x128xf32>
    %24 = vector.broadcast %23 : vector<1x128xf32> to vector<2x128xf32>
    %25 = arith.select %17, %22, %24 : vector<2x128xi1>, vector<2x128xf32>
    %c0_7 = arith.constant 0 : index
    %c0_8 = arith.constant 0 : index
    %26 = vector.load %arg4[%c0_7, %c0_8] : memref<2x128xf32, #tpu.memory_space<vmem>>, vector<2x128xf32>
    tpu.vector_store %arg4[%c0_7, %c0_8], %25 {strides = array<i32>} : memref<2x128xf32, #tpu.memory_space<vmem>>, vector<2x128xf32>,
    return
  }
  func.func @transform_0(%arg0: i32) -> (i32, i32) {
    %c0_i32 = arith.constant 0 : i32
    %c0_i32_0 = arith.constant 0 : i32
    return %arg0, %c0_i32 : i32, i32
  }
  func.func @transform_1(%arg0: i32) -> (i32, i32) {
    %c0_i32 = arith.constant 0 : i32
    %c0_i32_0 = arith.constant 0 : i32
    %c0_i32_1 = arith.constant 0 : i32
    return %c0_i32, %c0_i32_0 : i32, i32
  }
  func.func @transform_2(%arg0: i32) -> i32 {
    %c0_i32 = arith.constant 0 : i32
    %c0_i32_0 = arith.constant 0 : i32
    return %c0_i32 : i32
  }
  func.func @transform_3(%arg0: i32) -> (i32, i32) {
    %c0_i32 = arith.constant 0 : i32
    %c0_i32_0 = arith.constant 0 : i32
    return %c0_i32, %arg0 : i32, i32
  }
}

</mosaic_0001>

<llo_original>
// kernel: next_predict.1
$region0: #{next_predict.1}
  #allocation0 [shape = 'u32[]', space=smem, size = 0x4, offset = 0x4, fixed_abs, tag = 'smem constant byte address 0x4 - core index']
  #allocation1 [shape = 'u32[144,128]{1,0:T(1,128)}', space=vmem, size = 0x12000, scoped, tag = 'internal scratch']
  #allocation2 [shape = 'f32[1]{0:T(128)S(6)}', space=smem, size = 0x200, scoped, tag = 'scoped memory for next_predict.1']
  %s0 = inlined_call_operand.vmem [shape: f32[8,64], index: 0, kind: input, shape index: {}]
  %s1 = inlined_call_operand.vmem [shape: f32[8,64], index: 1, kind: input, shape index: {}]
  %s2 = inlined_call_operand.<no memory space> [shape: f32[1], index: 2, kind: input, shape index: {}]
  %s3 = inlined_call_operand.hbm [shape: f32[2,8], index: 3, kind: output, shape index: {}]
  %s4 = sld [smem:[#allocation0]]
  $region22: #{next_predict.1} parent=0
    _
  %s6 = ssub.s32 1, %s4
  %s7 = scalar_select 0, %s6, %s4
  %8 = sst [smem:[#allocation2]] %s2
  $region1: #{next_predict.1} parent=0
    #allocation3 [shape = 'u8[1024]{0}', space=vmem, size = 0x400, scoped, tag = 'output window, operand 0, single buffered']
    #allocation4 [shape = 's32[1]{0}', space=sflag, size = 0x4, scoped, tag = 'scoped memory for next_predict.1']
    %9 = vsyncpa [#allocation4], 0
    // Predicated region
    $region2: #{next_predict.1} parent=1 // pred_check
      _
    $region3: #{next_predict.1} parent=1 // pred_check_branch
      %11 = sbr.rel (0) target = $region5
    $region4: #{next_predict.1} parent=1 // pred_region
      _
    $region5: #{next_predict.1} parent=1 // pred_fallthru
      _
    // Predicated region
    $region6: #{next_predict.1} parent=1 // pred_check
      _
    $region7: #{next_predict.1} parent=1 // pred_check_branch
      %13 = sbr.rel (0) target = $region9
    $region8: #{next_predict.1} parent=1 // pred_region
      _
    $region9: #{next_predict.1} parent=1 // pred_fallthru
      _
    // Predicated region
    $region10: #{next_predict.1} parent=1 // pred_check
      _
    $region11: #{next_predict.1} parent=1 // pred_check_branch
      %15 = sbr.rel (0) target = $region13
    $region12: #{next_predict.1} parent=1 // pred_region
      _
    $region13: #{next_predict.1} parent=1 // pred_fallthru
      _
    %v16 = vld [vmem:[%s1] sm:$0xff]
    %v17 = vld [vmem:[%s0] sm:$0xff]
    %v18 = vld [vmem:[%s0 + $0x8] sm:$0xff]
    %v19 = vld [vmem:[%s0 + $0x10] sm:$0xff]
    %v20 = vld [vmem:[%s0 + $0x18] sm:$0xff]
    %v21 = vld [vmem:[%s0 + $0x20] sm:$0xff]
    %v22 = vld [vmem:[%s0 + $0x28] sm:$0xff]
    %v23 = vld [vmem:[%s0 + $0x30] sm:$0xff]
    %v24 = vld [vmem:[%s0 + $0x38] sm:$0xff]
    %v25 = vld [vmem:[%s0 + $0x40] sm:$0xff]
    %v26 = vld [vmem:[%s0 + $0x48] sm:$0xff]
    %v27 = vld [vmem:[%s0 + $0x50] sm:$0xff]
    %v28 = vld [vmem:[%s0 + $0x58] sm:$0xff]
    %v29 = vld [vmem:[%s0 + $0x60] sm:$0xff]
    %v30 = vld [vmem:[%s0 + $0x68] sm:$0xff]
    %v31 = vld [vmem:[%s0 + $0x70] sm:$0xff]
    %v32 = vld [vmem:[%s0 + $0x78] sm:$0xff]
    %vm33 = vcmask 523264
    %v35 = vsel %vm33, %v16, 0
    %v38 = vsel %vm33, %v17, 0
    %v41 = vsel %vm33, %v18, 0
    %v44 = vsel %vm33, %v19, 0
    %v47 = vsel %vm33, %v20, 0
    %v50 = vsel %vm33, %v21, 0
    %v53 = vsel %vm33, %v22, 0
    %v56 = vsel %vm33, %v23, 0
    %v59 = vsel %vm33, %v24, 0
    %v62 = vsel %vm33, %v25, 0
    %v65 = vsel %vm33, %v26, 0
    %v68 = vsel %vm33, %v27, 0
    %v71 = vsel %vm33, %v28, 0
    %v74 = vsel %vm33, %v29, 0
    %v77 = vsel %vm33, %v30, 0
    %v80 = vsel %vm33, %v31, 0
    %v83 = vsel %vm33, %v32, 0
    %85 = vmatprep.subr.mxu0 0.0
    %86 = vmatpush1.xpose.msra.mxu0 %v38
    %87 = vmatprep.subr.mxu0 0.0
    %88 = vmatpush1.xpose.msra.mxu0 %v41
    %89 = vmatprep.subr.mxu0 0.0
    %90 = vmatpush1.xpose.msra.mxu0 %v44
    %91 = vmatprep.subr.mxu0 0.0
    %92 = vmatpush1.xpose.msra.mxu0 %v47
    %93 = vmatprep.subr.mxu0 0.0
    %94 = vmatpush1.xpose.msra.mxu0 %v50
    %95 = vmatprep.subr.mxu0 0.0
    %96 = vmatpush1.xpose.msra.mxu0 %v53
    %97 = vmatprep.subr.mxu0 0.0
    %98 = vmatpush1.xpose.msra.mxu0 %v56
    %99 = vmatprep.subr.mxu0 0.0
    %100 = vmatpush1.xpose.msra.mxu0 %v59
    %101 = vmatprep.subr.mxu0 0.0
    %102 = vmatpush1.xpose.msra.mxu0 %v62
    %103 = vmatprep.subr.mxu0 0.0
    %104 = vmatpush1.xpose.msra.mxu0 %v65
    %105 = vmatprep.subr.mxu0 0.0
    %106 = vmatpush1.xpose.msra.mxu0 %v68
    %107 = vmatprep.subr.mxu0 0.0
    %108 = vmatpush1.xpose.msra.mxu0 %v71
    %109 = vmatprep.subr.mxu0 0.0
    %110 = vmatpush1.xpose.msra.mxu0 %v74
    %111 = vmatprep.subr.mxu0 0.0
    %112 = vmatpush1.xpose.msra.mxu0 %v77
    %113 = vmatprep.subr.mxu0 0.0
    %114 = vmatpush1.xpose.msra.mxu0 %v80
    %115 = vmatprep.subr.mxu0 0.0
    %116 = vmatpush1.xpose.msra.mxu0 %v83
    %117 = vmatprep.subr.mxu0 0.0
    %118 = vmatpush1.xpose.msra.mxu0 0.0
    %119 = vmatprep.subr.mxu0 0.0
    %120 = vmatpush1.xpose.msra.mxu0 0.0
    %121 = vmatprep.subr.mxu0 0.0
    %122 = vmatpush1.xpose.msra.mxu0 0.0
    %123 = vmatprep.subr.mxu0 0.0
    %124 = vmatpush1.xpose.msra.mxu0 0.0
    %125 = vmatprep.subr.mxu0 0.0
    %126 = vmatpush1.xpose.msra.mxu0 0.0
    %127 = vmatprep.subr.mxu0 0.0
    %128 = vmatpush1.xpose.msra.mxu0 0.0
    %129 = vmatprep.subr.mxu0 0.0
    %130 = vmatpush1.xpose.msra.mxu0 0.0
    %131 = vmatprep.subr.mxu0 0.0
    %132 = vmatpush1.xpose.msra.mxu0 0.0
    %133 = vmatprep.subr.mxu0 0.0
    %134 = vmatpush1.xpose.msra.mxu0 0.0
    %135 = vmatprep.subr.mxu0 0.0
    %136 = vmatpush1.xpose.msra.mxu0 0.0
    %137 = vmatprep.subr.mxu0 0.0
    %138 = vmatpush1.xpose.msra.mxu0 0.0
    %139 = vmatprep.subr.mxu0 0.0
    %140 = vmatpush1.xpose.msra.mxu0 0.0
    %141 = vmatprep.subr.mxu0 0.0
    %142 = vmatpush1.xpose.msra.mxu0 0.0
    %143 = vmatprep.subr.mxu0 0.0
    %144 = vmatpush1.xpose.msra.mxu0 0.0
    %145 = vmatprep.subr.mxu0 0.0
    %146 = vmatpush1.xpose.msra.mxu0 0.0
    %147 = vmatprep.subr.mxu0 0.0
    %148 = vmatpush1.xpose.msra.mxu0 0.0
    %149 = vmatprep.mubr.f32.mxu0 0.0
    %150 = vmatmul.mubr.f32.gmra.mrb[0].mxu0 %v35
    %v151 = vpop.f32.mrb[0].mxu0
    %v152 = vadd.f32 0.0, %v151
    %v153 = vpop.f32.mrb[0].mxu0
    %154 = vdwg.mxu0
    %s155 = sld [smem:[#allocation2]]
    %v156 = vstv %s155
    %v157 = vadd.f32 %v152, %v156
    %v158 = vmax.f32 %v157, 0.0
    %v159 = vand.u32 2147483647, %v157
    %v160 = vsub.f32 0.0, %v159
    %v161 = vmul.f32 %v160, 1.442695
    %v162 = vpow.pop %v161
    %v163 = vadd.f32 %v162, 1.0
    %v164 = vlog2.pop %v163
    %v165 = vmul.f32 %v164, 0.6931472
    %v166 = vmul.f32 -0.5, %v162
    %v167 = vadd.f32 %v166, 1.0
    %v168 = vmul.f32 %v167, %v162
    %v169 = vand.u32 2147483647, %v162
    %vm170 = vcmp.lt.f32.partialorder %v169, 0.0004427343
    %v171 = vsel %vm170, %v168, %v165
    %v172 = vadd.f32 %v158, %v171
    %v173 = vlaneseq
    %v174 = vshrl.u32 %v173, 7
    %vm175 = vcmp.eq.s32.totalorder %v174, 0
    %v176 = vsub.f32 %v157, %v172
    %v177 = vsub.f32 0.0, %v172
    %v178 = vlaneseq
    %v179 = vshrl.u32 %v178, 7
    %v180 = vsub.s32 0, %v179
    %v181 = vrot.slane %v176, %v180
    %v182 = vlaneseq
    %v183 = vshrl.u32 %v182, 7
    %v184 = vsub.s32 0, %v183
    %v185 = vrot.slane %v177, %v184
    %v186 = vsel %vm175, %v181, %v185
    %187 = vst [vmem:[#allocation3] sm:$0x3] %v186
    // Predicated region
    $region14: #{next_predict.1} parent=1 // pred_check
      _
    $region15: #{next_predict.1} parent=1 // pred_check_branch
      %189 = sbr.rel (0) target = $region17
    $region16: #{next_predict.1} parent=1 // pred_region
      %s191 = ssub.s32 32, 32
      %192 = vsyncadd [#allocation4], %s191
      %s194 = sshll.u32 [#allocation3], 4
      %s195 = int_to_ptr.vmem [resolvable:$true] %s194
      %197 = dma.vmem_to_hbm [thread:$0]  %s195, 32, %s3, [#allocation4]
    $region17: #{next_predict.1} parent=1 // pred_fallthru
      _
    // Predicated region
    $region18: #{next_predict.1} parent=1 // pred_check
      _
    $region19: #{next_predict.1} parent=1 // pred_check_branch
      %199 = sbr.rel (0) target = $region21
    $region20: #{next_predict.1} parent=1 // pred_region
      %200 = dma.done [#allocation4], 32
    $region21: #{next_predict.1} parent=1 // pred_fallthru
      _
    %201 = vsyncpa [#allocation4], 1

</llo_original>
